<compile_context>
chip_gen: v5e
topology: v5e:2x2
jax: 0.10.0
libtpu: 0.0.40
codegen_flags: <defaults>
</compile_context>

<pallas_src>
import functools

import jax
import jax.numpy as jnp
from jax import lax
from jax.experimental import pallas as pl
from jax.experimental.pallas import tpu as pltpu


def _vmem_spec():
    return pl.BlockSpec(memory_space=pltpu.MemorySpace.VMEM)


# ----------------------------------------------------------------------------
# Fused kernel: one-hot gather + masking + weighting + reductions + divide.
#   pred_ref : (N, C) f32   log-probabilities
#   tgt_ref  : (N, 1) i32   class indices
#   mask_ref : (N, 1) f32   flattened utterance mask
#   w_ref    : (1, C) f32   per-class weights (all ones when weight=None)
#   out_ref  : (1, 1) f32   scalar loss
# ----------------------------------------------------------------------------
def masked_nll_kernel(pred_ref, tgt_ref, mask_ref, w_ref, out_ref):
    pred = pred_ref[...]                                   # (N, C)
    tgt = tgt_ref[...]                                     # (N, 1)
    mask = mask_ref[...]                                   # (N, 1)
    w = w_ref[...]                                         # (1, C)

    n, c = pred.shape
    class_ids = lax.broadcasted_iota(jnp.int32, (n, c), 1)
    onehot = (class_ids == tgt).astype(jnp.float32)        # (N, C), one-hot of target

    gathered = jnp.sum(onehot * pred, axis=1, keepdims=True)   # pred[i, t_i]     (N, 1)
    w_t = jnp.sum(onehot * w, axis=1, keepdims=True)           # weight[t_i]      (N, 1)

    wm = w_t * mask                                          # (N, 1)
    num = jnp.sum(wm * gathered, keepdims=True)              # (1, 1)
    den = jnp.sum(wm, keepdims=True)                         # (1, 1)

    out_ref[...] = (-num / den).astype(out_ref.dtype)


# ----------------------------------------------------------------------------
# Wrapper: reshapes to kernel layout and issues the single pallas_call.
#   pred   : (batch*seq_len, n_classes) log-probs
#   target : (batch*seq_len,) int
#   mask   : (batch, seq_len) float
#   weight : optional (n_classes,) float
# ----------------------------------------------------------------------------
def masked_nll_loss(pred, target, mask, weight=None):
    n, c = pred.shape
    if weight is None:
        w = jnp.ones((1, c), jnp.float32)
    else:
        w = jnp.asarray(weight, jnp.float32).reshape(1, c)

    tgt = jnp.asarray(target, jnp.int32).reshape(n, 1)
    m = jnp.asarray(mask, jnp.float32).reshape(n, 1)

    out = pl.pallas_call(
        masked_nll_kernel,
        out_shape=jax.ShapeDtypeStruct((1, 1), jnp.float32),
        in_specs=[_vmem_spec()] * 4,
        out_specs=_vmem_spec(),
    )(pred.astype(jnp.float32), tgt, m, w)
    return out[0, 0]


# ----------------------------------------------------------------------------
# Pure-JAX reference (mirrors the PyTorch module exactly) for verification.
# ----------------------------------------------------------------------------
def masked_nll_loss_ref(pred, target, mask, weight=None):
    mask_ = mask.reshape(-1, 1)
    masked_pred = pred * mask_
    picked = jnp.take_along_axis(masked_pred, target.reshape(-1, 1), axis=1)[:, 0]
    if weight is None:
        return -jnp.sum(picked) / jnp.sum(mask)
    w_t = weight[target]
    return -jnp.sum(w_t * picked) / jnp.sum(w_t * mask_.squeeze())


if __name__ == "__main__":
    # Small shapes consistent with the module: batch=2, seq_len=8, n_classes=7 (DailyDialog).
    batch, seq_len, n_classes = 2, 8, 7
    n = batch * seq_len

    key = jax.random.PRNGKey(0)
    k_logits, k_tgt, k_w = jax.random.split(key, 3)

    # pred: log-probabilities (as produced by the upstream log_softmax head).
    logits = jax.random.normal(k_logits, (n, n_classes), jnp.float32)
    pred = jax.nn.log_softmax(logits, axis=-1)

    target = jax.random.randint(k_tgt, (n,), 0, n_classes, jnp.int32)

    # mask: first dialogue fully valid, second has 5/8 valid utterances.
    lengths = jnp.array([8, 5], jnp.int32)
    mask = (lax.broadcasted_iota(jnp.int32, (batch, seq_len), 1)
            < lengths[:, None]).astype(jnp.float32)

    class_weight = jax.random.uniform(k_w, (n_classes,), jnp.float32, 0.5, 1.5)

    fwd = jax.jit(masked_nll_loss)

    # Unweighted branch (weight=None, the module default).
    loss = jax.block_until_ready(fwd(pred, target, mask))
    ref = masked_nll_loss_ref(pred, target, mask)
    assert loss.shape == ()
    assert bool(jnp.isfinite(loss))
    assert bool(jnp.allclose(loss, ref, rtol=1e-5, atol=1e-5)), (loss, ref)

    # Weighted branch.
    loss_w = jax.block_until_ready(fwd(pred, target, mask, class_weight))
    ref_w = masked_nll_loss_ref(pred, target, mask, class_weight)
    assert bool(jnp.isfinite(loss_w))
    assert bool(jnp.allclose(loss_w, ref_w, rtol=1e-5, atol=1e-5)), (loss_w, ref_w)

    print("KERNEL_OK")
</pallas_src>

<mosaic_0001>
module attributes {stable_mosaic.version = 11 : i64} {
  func.func @masked_nll_kernel(%arg0: memref<16x7xf32, #tpu.memory_space<vmem>>, %arg1: memref<16x1xi32, #tpu.memory_space<vmem>>, %arg2: memref<16x1xf32, #tpu.memory_space<vmem>>, %arg3: memref<1x7xf32, #tpu.memory_space<vmem>>, %arg4: memref<1x1xf32, #tpu.memory_space<vmem>>) attributes {dimension_semantics = [], scalar_prefetch = 0 : i64, scratch_operands = 0 : i64, tpu.core_type = #tpu.core_type<tc>} {
    %c0 = arith.constant 0 : index
    %c0_0 = arith.constant 0 : index
    %0 = vector.load %arg0[%c0, %c0_0] : memref<16x7xf32, #tpu.memory_space<vmem>>, vector<16x7xf32>
    %c0_1 = arith.constant 0 : index
    %c0_2 = arith.constant 0 : index
    %1 = vector.load %arg1[%c0_1, %c0_2] : memref<16x1xi32, #tpu.memory_space<vmem>>, vector<16x1xi32>
    %c0_3 = arith.constant 0 : index
    %c0_4 = arith.constant 0 : index
    %2 = vector.load %arg2[%c0_3, %c0_4] : memref<16x1xf32, #tpu.memory_space<vmem>>, vector<16x1xf32>
    %c0_5 = arith.constant 0 : index
    %c0_6 = arith.constant 0 : index
    %3 = vector.load %arg3[%c0_5, %c0_6] : memref<1x7xf32, #tpu.memory_space<vmem>>, vector<1x7xf32>
    %4 = tpu.iota {dimensions = array<i32: 1>} : vector<16x7xi32>
    %5 = vector.broadcast %1 : vector<16x1xi32> to vector<16x7xi32>
    %6 = arith.cmpi eq, %4, %5 : vector<16x7xi32>
    %7 = arith.extui %6 : vector<16x7xi1> to vector<16x7xi32>
    %8 = arith.sitofp %7 : vector<16x7xi32> to vector<16x7xf32>
    %9 = arith.mulf %8, %0 : vector<16x7xf32>
    %cst = arith.constant dense<0.000000e+00> : vector<16xf32>
    %10 = vector.multi_reduction <add>, %9, %cst [1] : vector<16x7xf32> to vector<16xf32>
    %11 = vector.shape_cast %10 : vector<16xf32> to vector<16x1xf32>
    %12 = vector.broadcast %3 : vector<1x7xf32> to vector<16x7xf32>
    %13 = arith.mulf %8, %12 : vector<16x7xf32>
    %cst_7 = arith.constant dense<0.000000e+00> : vector<16xf32>
    %14 = vector.multi_reduction <add>, %13, %cst_7 [1] : vector<16x7xf32> to vector<16xf32>
    %15 = vector.shape_cast %14 : vector<16xf32> to vector<16x1xf32>
    %16 = arith.mulf %15, %2 : vector<16x1xf32>
    %17 = arith.mulf %16, %11 : vector<16x1xf32>
    %18 = vector.shape_cast %17 : vector<16x1xf32> to vector<1x16x1xf32>
    %cst_8 = arith.constant dense<0.000000e+00> : vector<1xf32>
    %19 = vector.multi_reduction <add>, %18, %cst_8 [1, 2] : vector<1x16x1xf32> to vector<1xf32>
    %20 = vector.shape_cast %19 : vector<1xf32> to vector<1x1x1xf32>
    %21 = vector.extract %20[0, 0, 0] : f32 from vector<1x1x1xf32>
    %22 = vector.broadcast %21 : f32 to vector<1x1xf32>
    %23 = vector.shape_cast %16 : vector<16x1xf32> to vector<1x16x1xf32>
    %cst_9 = arith.constant dense<0.000000e+00> : vector<1xf32>
    %24 = vector.multi_reduction <add>, %23, %cst_9 [1, 2] : vector<1x16x1xf32> to vector<1xf32>
    %25 = vector.shape_cast %24 : vector<1xf32> to vector<1x1x1xf32>
    %26 = vector.extract %25[0, 0, 0] : f32 from vector<1x1x1xf32>
    %27 = vector.broadcast %26 : f32 to vector<1x1xf32>
    %cst_10 = arith.constant 0.000000e+00 : f32
    %28 = vector.broadcast %cst_10 : f32 to vector<1x1xf32>
    %29 = arith.subf %28, %22 : vector<1x1xf32>
    %30 = arith.divf %29, %27 : vector<1x1xf32>
    %c0_11 = arith.constant 0 : index
    %c0_12 = arith.constant 0 : index
    %31 = vector.load %arg4[%c0_11, %c0_12] : memref<1x1xf32, #tpu.memory_space<vmem>>, vector<1x1xf32>
    tpu.vector_store %arg4[%c0_11, %c0_12], %30 {strides = array<i32>} : memref<1x1xf32, #tpu.memory_space<vmem>>, vector<1x1xf32>,
    return
  }
}

</mosaic_0001>

<llo_original>
// kernel: masked_nll_loss.1
$region0: #{masked_nll_loss.1}
  #allocation0 [shape = 'u32[]', space=smem, size = 0x4, offset = 0x4, fixed_abs, tag = 'smem constant byte address 0x4 - core index']
  #allocation1 [shape = 'u32[72,128]{1,0:T(1,128)}', space=vmem, size = 0x9000, scoped, tag = 'internal scratch']
  %s0 = inlined_call_operand.vmem [shape: f32[16,7], index: 0, kind: input, shape index: {}]
  %s1 = inlined_call_operand.vmem [shape: s32[16,1], index: 1, kind: input, shape index: {}]
  %s2 = inlined_call_operand.vmem [shape: f32[16,1], index: 2, kind: input, shape index: {}]
  %s3 = inlined_call_operand.vmem [shape: f32[1,7], index: 3, kind: input, shape index: {}]
  %s4 = inlined_call_operand.hbm [shape: f32[1,1], index: 4, kind: output, shape index: {}]
  %s5 = sld [smem:[#allocation0]]
  $region26: #{masked_nll_loss.1} parent=0
    _
  %s7 = ssub.s32 1, %s5
  %s8 = scalar_select 0, %s7, %s5
  $region1: #{masked_nll_loss.1} parent=0
    #allocation2 [shape = 'u8[512]{0}', space=vmem, size = 0x400, scoped, tag = 'output window, operand 0, single buffered']
    #allocation3 [shape = 's32[1]{0}', space=sflag, size = 0x4, scoped, tag = 'scoped memory for masked_nll_loss.1']
    %9 = vsyncpa [#allocation3], 0
    // Predicated region
    $region2: #{masked_nll_loss.1} parent=1 // pred_check
      _
    $region3: #{masked_nll_loss.1} parent=1 // pred_check_branch
      %11 = sbr.rel (0) target = $region5
    $region4: #{masked_nll_loss.1} parent=1 // pred_region
      _
    $region5: #{masked_nll_loss.1} parent=1 // pred_fallthru
      _
    // Predicated region
    $region6: #{masked_nll_loss.1} parent=1 // pred_check
      _
    $region7: #{masked_nll_loss.1} parent=1 // pred_check_branch
      %13 = sbr.rel (0) target = $region9
    $region8: #{masked_nll_loss.1} parent=1 // pred_region
      _
    $region9: #{masked_nll_loss.1} parent=1 // pred_fallthru
      _
    // Predicated region
    $region10: #{masked_nll_loss.1} parent=1 // pred_check
      _
    $region11: #{masked_nll_loss.1} parent=1 // pred_check_branch
      %15 = sbr.rel (0) target = $region13
    $region12: #{masked_nll_loss.1} parent=1 // pred_region
      _
    $region13: #{masked_nll_loss.1} parent=1 // pred_fallthru
      _
    // Predicated region
    $region14: #{masked_nll_loss.1} parent=1 // pred_check
      _
    $region15: #{masked_nll_loss.1} parent=1 // pred_check_branch
      %17 = sbr.rel (0) target = $region17
    $region16: #{masked_nll_loss.1} parent=1 // pred_region
      _
    $region17: #{masked_nll_loss.1} parent=1 // pred_fallthru
      _
    %v18 = vld [vmem:[%s0] sm:$0xff]
    %v19 = vld [vmem:[%s0 + $0x8] sm:$0xff]
    %v20 = vld [vmem:[%s1] sm:$0xff]
    %v21 = vld [vmem:[%s1 + $0x8] sm:$0xff]
    %v22 = vld [vmem:[%s2] sm:$0xff]
    %v23 = vld [vmem:[%s2 + $0x8] sm:$0xff]
    %v24 = vld [vmem:[%s3] sm:$0x1]
    %v25 = vlaneseq
    %v26 = vand.u32 %v25, 127
    %27 = vset.pattern.permute.xlu0 0
    %28 = vperm.xlu0 %27, %v20
    %v29 = vpop.permute.xlu0 %28
    %30 = vset.pattern.permute.xlu0 0
    %31 = vperm.xlu0 %30, %v21
    %v32 = vpop.permute.xlu0 %31
    %vm33 = vcmp.eq.s32.totalorder %v26, %v29
    %vm34 = vcmp.eq.s32.totalorder %v26, %v32
    %v35 = vsel %vm33, 1, 0
    %v36 = vsel %vm34, 1, 0
    %v37 = vcvt.s32.f32 %v35
    %v38 = vcvt.s32.f32 %v36
    %v39 = vmul.f32 %v37, %v18
    %v40 = vmul.f32 %v38, %v19
    %vm41 = vcmask 56320
    %v42 = vsel %vm41, %v39, 0.0
    %43 = vadd.xlane.f32.xlu0 %v42
    %v44 = vpop.xlane.xlu0 %43
    %v45 = vsel %vm41, %v40, 0.0
    %46 = vadd.xlane.f32.xlu0 %v45
    %v47 = vpop.xlane.xlu0 %46
    %v49 = vperm.slane %v24, 0
    %v51 = vmul.f32 %v37, %v49
    %v52 = vmul.f32 %v38, %v49
    %v53 = vsel %vm41, %v51, 0.0
    %54 = vadd.xlane.f32.xlu0 %v53
    %v55 = vpop.xlane.xlu0 %54
    %v56 = vsel %vm41, %v52, 0.0
    %57 = vadd.xlane.f32.xlu0 %v56
    %v58 = vpop.xlane.xlu0 %57
    %v59 = vmul.f32 %v55, %v22
    %v60 = vmul.f32 %v58, %v23
    %v61 = vmul.f32 %v59, %v44
    %v62 = vmul.f32 %v60, %v47
    %vm63 = vcmask 7168
    %v64 = vsel %vm63, %v61, 0.0
    %v65 = vsel %vm63, %v62, 0.0
    %v66 = vadd.f32 %v64, %v65
    %67 = vadd.xlane.f32.xlu0 %v66
    %v68 = vpop.xlane.xlu0 %67
    %v69 = vrot.slane %v68, 4
    %v70 = vadd.f32 %v68, %v69
    %v71 = vrot.slane %v70, 2
    %v72 = vadd.f32 %v70, %v71
    %v73 = vrot.slane %v72, 1
    %v74 = vadd.f32 %v72, %v73
    %s75 = vtos %v74
    %v76 = vstv %s75
    %v77 = vsel %vm63, %v59, 0.0
    %v78 = vsel %vm63, %v60, 0.0
    %v79 = vadd.f32 %v77, %v78
    %80 = vadd.xlane.f32.xlu0 %v79
    %v81 = vpop.xlane.xlu0 %80
    %v82 = vrot.slane %v81, 4
    %v83 = vadd.f32 %v81, %v82
    %v84 = vrot.slane %v83, 2
    %v85 = vadd.f32 %v83, %v84
    %v86 = vrot.slane %v85, 1
    %v87 = vadd.f32 %v85, %v86
    %s88 = vtos %v87
    %v89 = vstv %s88
    %v90 = vsub.f32 0.0, %v76
    %v91 = vrcp.pop %v89
    %v92 = vmul.f32 %v89, %v91
    %v93 = vsub.f32 1.0, %v92
    %v94 = vmul.f32 %v91, %v93
    %v95 = vadd.f32 %v91, %v94
    %vm96 = vweird.f32 %v89
    %vm97 = vweird.f32 %v91
    %vm98 = vmor %vm96, %vm97
    %v99 = vsel %vm98, %v91, %v95
    %v100 = vand.u32 2147483647, %v89
    %vm101 = vcmp.eq.f32.partialorder %v100, 8.507059e+37
    %v102 = vand.u32 %v89, 2147483648
    %v103 = vor.u32 1.1754944e-38, %v102
    %v104 = vsel %vm101, %v103, %v99
    %v105 = vmul.f32 %v90, %v104
    %vm106 = vcmask 0
    %107 = vst.msk [vmem:[#allocation2] sm:$0x1] %vm106, %v105
    // Predicated region
    $region18: #{masked_nll_loss.1} parent=1 // pred_check
      _
    $region19: #{masked_nll_loss.1} parent=1 // pred_check_branch
      %109 = sbr.rel (0) target = $region21
    $region20: #{masked_nll_loss.1} parent=1 // pred_region
      %111 = vsyncadd [#allocation3], 0
      %s113 = sshll.u32 [#allocation2], 4
      %s114 = int_to_ptr.vmem [resolvable:$true] %s113
      %s115 = sshll.u32 %s4, 4
      %s116 = int_to_ptr.hbm [resolvable:$true] %s115
      %118 = dma.vmem_to_hbm [thread:$0]  %s114, 16, %s116, [#allocation3]
    $region21: #{masked_nll_loss.1} parent=1 // pred_fallthru
      _
    // Predicated region
    $region22: #{masked_nll_loss.1} parent=1 // pred_check
      _
    $region23: #{masked_nll_loss.1} parent=1 // pred_check_branch
      %120 = sbr.rel (0) target = $region25
    $region24: #{masked_nll_loss.1} parent=1 // pred_region
      %122 = dma.done [#allocation3], 16
    $region25: #{masked_nll_loss.1} parent=1 // pred_fallthru
      _
    %123 = vsyncpa [#allocation3], 1

</llo_original>
